<compile_context>
chip_gen: v5e
topology: v5e:2x2
jax: 0.10.0
libtpu: 0.0.40
codegen_flags: <defaults>
</compile_context>

<pallas_src>
import functools

import jax
import jax.numpy as jnp
from jax.experimental import pallas as pl
from jax.experimental.pallas import tpu as pltpu


def _round_up(x, m):
    return (x + m - 1) // m * m


_MAX_SINGLE_TILE = 2048  # largest batch handled as one full-extent block


def _choose_batch_tile(batch):
    """Return (tile, padded_batch). Prefers no padding and >=2 grid steps."""
    if batch % 128 == 0:
        for cand in (1024, 512, 256, 128):
            if batch % cand == 0 and batch // cand >= 2:
                return cand, batch          # pad-free, >=2 steps (v7x megacore)
        return batch, batch                 # exactly one 128-aligned tile
    if batch <= _MAX_SINGLE_TILE:
        return batch, batch                 # single full-extent block, no pad
    bp = _round_up(batch, 128)               # large ragged batch: pad <= 127 rows
    for cand in (1024, 512, 256, 128):
        if bp % cand == 0:
            return cand, bp
    return 128, bp


def _softq_kernel(xa_ref, w0_ref, b0_ref, *rest, num_hidden_layers):
    if num_hidden_layers > 0:
        wh_ref, bh_ref, wl_ref, bl_ref, out_ref = rest
    else:
        wl_ref, bl_ref, out_ref = rest

    w_dtype = w0_ref.dtype  # f32 or bf16; MXU accumulates in f32 either way.

    # Layer 0: one MXU push.  K = obs+act (tiny), N = batch tile (lane-dense).
    h = jnp.dot(w0_ref[...], xa_ref[...].astype(w_dtype),
                preferred_element_type=jnp.float32)        # (H, TB) f32
    h = jnp.maximum(h + b0_ref[...], 0.0)                   # bias + ReLU on VPU

    # Hidden layers: static Python unroll (num_hidden_layers is small & static).
    for i in range(num_hidden_layers):
        hi = jnp.dot(wh_ref[i], h.astype(w_dtype),
                     preferred_element_type=jnp.float32)    # (H, TB)
        h = jnp.maximum(hi + bh_ref[i], 0.0)

    # Final (H -> 1) layer: VPU multiply + sublane reduce -> lane-dense (1, TB).
    q = jnp.sum(h * wl_ref[...].astype(jnp.float32), axis=0, keepdims=True)
    out_ref[...] = q + bl_ref[...]


def soft_q_forward(x, a, params):
    """Forward pass of SoftQNetwork: (x, a) -> MLP -> (B, 1) Q-values."""
    w0, b0 = params["w0"], params["b0"]
    wh, bh = params["wh"], params["bh"]
    wl, bl = params["wl"], params["bl"]

    hidden, in_dim = w0.shape
    num_hidden_layers = wh.shape[0]
    batch = x.shape[0]
    assert x.shape[1] + a.shape[1] == in_dim

    tb, bp = _choose_batch_tile(batch)

    # Fused concat + transpose (+ optional pad): a single wrapper-side copy
    # producing the lane-dense (obs+act, B) operand the kernel wants.
    xa_t = jnp.concatenate([x.astype(jnp.float32), a.astype(jnp.float32)],
                           axis=1).T                          # (in_dim, B)
    if bp != batch:
        xa_t = jnp.pad(xa_t, ((0, 0), (0, bp - batch)))

    def const_spec(shape):
        return pl.BlockSpec(tuple(shape), lambda i, _n=len(shape): (0,) * _n)

    in_specs = [
        pl.BlockSpec((in_dim, tb), lambda i: (0, i)),   # activation tile
        const_spec(w0.shape),                           # weights: VMEM-resident
        const_spec(b0.shape),
    ]
    args = [xa_t, w0, b0]
    if num_hidden_layers > 0:
        in_specs += [const_spec(wh.shape), const_spec(bh.shape)]
        args += [wh, bh]
    in_specs += [const_spec(wl.shape), const_spec(bl.shape)]
    args += [wl, bl]

    flops = 2 * bp * (in_dim * hidden
                      + num_hidden_layers * hidden * hidden + hidden)
    param_bytes = sum(int(p.size) * int(p.dtype.itemsize)
                      for p in (w0, b0, wh, bh, wl, bl))
    bytes_accessed = 4 * (int(xa_t.size) + bp) + param_bytes

    q = pl.pallas_call(
        functools.partial(_softq_kernel,
                          num_hidden_layers=num_hidden_layers),
        out_shape=jax.ShapeDtypeStruct((1, bp), jnp.float32),
        grid=(bp // tb,),
        in_specs=in_specs,
        out_specs=pl.BlockSpec((1, tb), lambda i: (0, i)),
        compiler_params=pltpu.CompilerParams(
            dimension_semantics=("parallel",)),
        cost_estimate=pl.CostEstimate(flops=int(flops), transcendentals=0,
                                      bytes_accessed=int(bytes_accessed)),
    )(*args)

    return q[0, :batch].reshape(batch, 1)


def init_params(key, obs_dim, act_dim, hidden_dim, hidden_layers,
                weight_dtype=jnp.float32):
    """nn.Linear-style U(-1/sqrt(fan_in), 1/sqrt(fan_in)) init.

    Weights may be bf16 (v6e/v7x MXU-native); biases stay f32 so all
    elementwise work happens on the f32 accumulator (v5e-safe).
    """
    in_dim = obs_dim + act_dim
    keys = jax.random.split(key, 2 * (hidden_layers + 2))

    def uniform(k, shape, fan_in):
        bound = float(fan_in) ** -0.5
        return jax.random.uniform(k, shape, jnp.float32, -bound, bound)

    params = {
        "w0": uniform(keys[0], (hidden_dim, in_dim), in_dim).astype(weight_dtype),
        "b0": uniform(keys[1], (hidden_dim, 1), in_dim),
    }

    wh, bh = [], []
    for i in range(hidden_layers):
        wh.append(uniform(keys[2 + 2 * i], (hidden_dim, hidden_dim),
                          hidden_dim).astype(weight_dtype))
        bh.append(uniform(keys[3 + 2 * i], (hidden_dim, 1), hidden_dim))
    if hidden_layers > 0:
        params["wh"] = jnp.stack(wh, axis=0)               # (L, H, H)
        params["bh"] = jnp.stack(bh, axis=0)               # (L, H, 1)
    else:
        params["wh"] = jnp.zeros((0, hidden_dim, hidden_dim), weight_dtype)
        params["bh"] = jnp.zeros((0, hidden_dim, 1), jnp.float32)

    params["wl"] = uniform(keys[-2], (hidden_dim, 1),
                           hidden_dim).astype(weight_dtype)  # fc_last.weight.T
    params["bl"] = uniform(keys[-1], (1, 1), hidden_dim)
    return params


def reference_forward(x, a, params):
    """Pure-JAX f32 reference matching the PyTorch module."""
    h = jnp.concatenate([x, a], axis=1)
    h = jnp.maximum(h @ params["w0"].astype(jnp.float32).T
                    + params["b0"][:, 0], 0.0)
    for i in range(params["wh"].shape[0]):
        h = jnp.maximum(h @ params["wh"][i].astype(jnp.float32).T
                        + params["bh"][i][:, 0], 0.0)
    return h @ params["wl"].astype(jnp.float32) + params["bl"][0]


# TODO(synk): for SAC, the two critics (qf1/qf2) can be fused into one call by
# stacking their weights on a leading axis and emitting two (1, TB) outputs;
# kept single-critic here to match the module's forward signature.


if __name__ == "__main__":
    # Small shapes implied by the module: obs (16,), action (4,),
    # hidden_dim=32, hidden_layers=2, batch=8.
    BATCH, OBS_DIM, ACT_DIM = 8, 16, 4
    HIDDEN_DIM, HIDDEN_LAYERS = 32, 2

    key = jax.random.PRNGKey(0)
    k_params, k_x, k_a = jax.random.split(key, 3)

    x = jax.random.normal(k_x, (BATCH, OBS_DIM), jnp.float32)
    a = jax.random.normal(k_a, (BATCH, ACT_DIM), jnp.float32)

    # f32 weights: tight comparison against the pure-JAX reference.
    params = init_params(k_params, OBS_DIM, ACT_DIM, HIDDEN_DIM, HIDDEN_LAYERS)
    out = jax.block_until_ready(soft_q_forward(x, a, params))
    ref = reference_forward(x, a, params)
    assert out.shape == (BATCH, 1), out.shape
    assert jnp.allclose(out, ref, atol=1e-5, rtol=1e-5), (out, ref)

    # Multi-tile / megacore path: 128-aligned batch -> 2 grid steps of 128.
    xb = jax.random.normal(k_x, (256, OBS_DIM), jnp.float32)
    ab = jax.random.normal(k_a, (256, ACT_DIM), jnp.float32)
    outb = jax.block_until_ready(soft_q_forward(xb, ab, params))
    refb = reference_forward(xb, ab, params)
    assert outb.shape == (256, 1)
    assert jnp.allclose(outb, refb, atol=1e-5, rtol=1e-5)

    # hidden_layers == 0 path (no zero-sized blocks reach Mosaic).
    params0 = init_params(k_params, OBS_DIM, ACT_DIM, HIDDEN_DIM, 0)
    out0 = jax.block_until_ready(soft_q_forward(x, a, params0))
    ref0 = reference_forward(x, a, params0)
    assert jnp.allclose(out0, ref0, atol=1e-5, rtol=1e-5), (out0, ref0)

    # bf16-weight path (v6e/v7x MXU-native); f32 accumulation keeps error small.
    params_bf16 = init_params(k_params, OBS_DIM, ACT_DIM, HIDDEN_DIM,
                              HIDDEN_LAYERS, weight_dtype=jnp.bfloat16)
    out_bf16 = jax.block_until_ready(soft_q_forward(x, a, params_bf16))
    ref_bf16 = reference_forward(x, a, params_bf16)
    assert jnp.allclose(out_bf16, ref_bf16, atol=5e-2, rtol=5e-2)

    print("KERNEL_OK")
</pallas_src>

<mosaic_0001>
module attributes {stable_mosaic.version = 11 : i64} {
  func.func @_softq_kernel(%arg0: i32, %arg1: memref<20x8xf32, #tpu.memory_space<vmem>>, %arg2: memref<32x20xf32, #tpu.memory_space<vmem>>, %arg3: memref<32x1xf32, #tpu.memory_space<vmem>>, %arg4: memref<2x32x32xf32, #tpu.memory_space<vmem>>, %arg5: memref<2x32x1xf32, #tpu.memory_space<vmem>>, %arg6: memref<32x1xf32, #tpu.memory_space<vmem>>, %arg7: memref<1x1xf32, #tpu.memory_space<vmem>>, %arg8: memref<1x8xf32, #tpu.memory_space<vmem>>) attributes {dimension_semantics = [#tpu.dimension_semantics<parallel>], iteration_bounds = array<i64: 1>, scalar_prefetch = 0 : i64, scratch_operands = 0 : i64, tpu.core_type = #tpu.core_type<tc>, window_params = [{transform_indices = @transform_0, window_bounds = array<i64: 20, 8>}, {pipeline_mode = #tpu.pipeline_mode<synchronous>, transform_indices = @transform_1, window_bounds = array<i64: 32, 20>}, {pipeline_mode = #tpu.pipeline_mode<synchronous>, transform_indices = @transform_2, window_bounds = array<i64: 32, 1>}, {pipeline_mode = #tpu.pipeline_mode<synchronous>, transform_indices = @transform_3, window_bounds = array<i64: 2, 32, 32>}, {pipeline_mode = #tpu.pipeline_mode<synchronous>, transform_indices = @transform_4, window_bounds = array<i64: 2, 32, 1>}, {pipeline_mode = #tpu.pipeline_mode<synchronous>, transform_indices = @transform_5, window_bounds = array<i64: 32, 1>}, {pipeline_mode = #tpu.pipeline_mode<synchronous>, transform_indices = @transform_6, window_bounds = array<i64: 1, 1>}, {transform_indices = @transform_7, window_bounds = array<i64: 1, 8>}]} {
    %c0 = arith.constant 0 : index
    %c0_0 = arith.constant 0 : index
    %0 = vector.load %arg2[%c0, %c0_0] : memref<32x20xf32, #tpu.memory_space<vmem>>, vector<32x20xf32>
    %c0_1 = arith.constant 0 : index
    %c0_2 = arith.constant 0 : index
    %1 = vector.load %arg1[%c0_1, %c0_2] : memref<20x8xf32, #tpu.memory_space<vmem>>, vector<20x8xf32>
    %cst = arith.constant dense<0.000000e+00> : vector<32x8xf32>
    %2 = tpu.matmul %0, %1, %cst {dimension_numbers = #tpu.dot_dimension_numbers<[1], [0], [0], [1], [0, 0, 1, 1], [], []>} : vector<32x20xf32>, vector<20x8xf32>, vector<32x8xf32> -> vector<32x8xf32>
    %c0_3 = arith.constant 0 : index
    %c0_4 = arith.constant 0 : index
    %3 = vector.load %arg3[%c0_3, %c0_4] : memref<32x1xf32, #tpu.memory_space<vmem>>, vector<32x1xf32>
    %4 = vector.broadcast %3 : vector<32x1xf32> to vector<32x8xf32>
    %5 = arith.addf %2, %4 : vector<32x8xf32>
    %cst_5 = arith.constant 0.000000e+00 : f32
    %6 = vector.broadcast %cst_5 : f32 to vector<32x8xf32>
    %7 = arith.maximumf %5, %6 : vector<32x8xf32>
    %c0_6 = arith.constant 0 : index
    %c0_7 = arith.constant 0 : index
    %c0_8 = arith.constant 0 : index
    %8 = vector.load %arg4[%c0_6, %c0_7, %c0_8] : memref<2x32x32xf32, #tpu.memory_space<vmem>>, vector<1x32x32xf32>
    %9 = vector.shape_cast %8 : vector<1x32x32xf32> to vector<32x32xf32>
    %cst_9 = arith.constant dense<0.000000e+00> : vector<32x8xf32>
    %10 = tpu.matmul %9, %7, %cst_9 {dimension_numbers = #tpu.dot_dimension_numbers<[1], [0], [0], [1], [0, 0, 1, 1], [], []>} : vector<32x32xf32>, vector<32x8xf32>, vector<32x8xf32> -> vector<32x8xf32>
    %c0_10 = arith.constant 0 : index
    %c0_11 = arith.constant 0 : index
    %c0_12 = arith.constant 0 : index
    %11 = vector.load %arg5[%c0_10, %c0_11, %c0_12] : memref<2x32x1xf32, #tpu.memory_space<vmem>>, vector<1x32x1xf32>
    %12 = vector.shape_cast %11 : vector<1x32x1xf32> to vector<32x1xf32>
    %13 = vector.broadcast %12 : vector<32x1xf32> to vector<32x8xf32>
    %14 = arith.addf %10, %13 : vector<32x8xf32>
    %cst_13 = arith.constant 0.000000e+00 : f32
    %15 = vector.broadcast %cst_13 : f32 to vector<32x8xf32>
    %16 = arith.maximumf %14, %15 : vector<32x8xf32>
    %c1 = arith.constant 1 : index
    %c0_14 = arith.constant 0 : index
    %c0_15 = arith.constant 0 : index
    %17 = vector.load %arg4[%c1, %c0_14, %c0_15] : memref<2x32x32xf32, #tpu.memory_space<vmem>>, vector<1x32x32xf32>
    %18 = vector.shape_cast %17 : vector<1x32x32xf32> to vector<32x32xf32>
    %cst_16 = arith.constant dense<0.000000e+00> : vector<32x8xf32>
    %19 = tpu.matmul %18, %16, %cst_16 {dimension_numbers = #tpu.dot_dimension_numbers<[1], [0], [0], [1], [0, 0, 1, 1], [], []>} : vector<32x32xf32>, vector<32x8xf32>, vector<32x8xf32> -> vector<32x8xf32>
    %c1_17 = arith.constant 1 : index
    %c0_18 = arith.constant 0 : index
    %c0_19 = arith.constant 0 : index
    %20 = vector.load %arg5[%c1_17, %c0_18, %c0_19] : memref<2x32x1xf32, #tpu.memory_space<vmem>>, vector<1x32x1xf32>
    %21 = vector.shape_cast %20 : vector<1x32x1xf32> to vector<32x1xf32>
    %22 = vector.broadcast %21 : vector<32x1xf32> to vector<32x8xf32>
    %23 = arith.addf %19, %22 : vector<32x8xf32>
    %cst_20 = arith.constant 0.000000e+00 : f32
    %24 = vector.broadcast %cst_20 : f32 to vector<32x8xf32>
    %25 = arith.maximumf %23, %24 : vector<32x8xf32>
    %c0_21 = arith.constant 0 : index
    %c0_22 = arith.constant 0 : index
    %26 = vector.load %arg6[%c0_21, %c0_22] : memref<32x1xf32, #tpu.memory_space<vmem>>, vector<32x1xf32>
    %27 = vector.broadcast %26 : vector<32x1xf32> to vector<32x8xf32>
    %28 = arith.mulf %25, %27 : vector<32x8xf32>
    %cst_23 = arith.constant dense<0.000000e+00> : vector<8xf32>
    %29 = vector.multi_reduction <add>, %28, %cst_23 [0] : vector<32x8xf32> to vector<8xf32>
    %30 = vector.shape_cast %29 : vector<8xf32> to vector<1x8xf32>
    %c0_24 = arith.constant 0 : index
    %c0_25 = arith.constant 0 : index
    %31 = vector.load %arg7[%c0_24, %c0_25] : memref<1x1xf32, #tpu.memory_space<vmem>>, vector<1x1xf32>
    %32 = vector.broadcast %31 : vector<1x1xf32> to vector<1x8xf32>
    %33 = arith.addf %30, %32 : vector<1x8xf32>
    %c0_26 = arith.constant 0 : index
    %c0_27 = arith.constant 0 : index
    %34 = vector.load %arg8[%c0_26, %c0_27] : memref<1x8xf32, #tpu.memory_space<vmem>>, vector<1x8xf32>
    tpu.vector_store %arg8[%c0_26, %c0_27], %33 {strides = array<i32>} : memref<1x8xf32, #tpu.memory_space<vmem>>, vector<1x8xf32>,
    return
  }
  func.func @transform_0(%arg0: i32) -> (i32, i32) {
    %c0_i32 = arith.constant 0 : i32
    %c0_i32_0 = arith.constant 0 : i32
    return %c0_i32, %arg0 : i32, i32
  }
  func.func @transform_1(%arg0: i32) -> (i32, i32) {
    %c0_i32 = arith.constant 0 : i32
    %c0_i32_0 = arith.constant 0 : i32
    %c0_i32_1 = arith.constant 0 : i32
    return %c0_i32, %c0_i32_0 : i32, i32
  }
  func.func @transform_2(%arg0: i32) -> (i32, i32) {
    %c0_i32 = arith.constant 0 : i32
    %c0_i32_0 = arith.constant 0 : i32
    %c0_i32_1 = arith.constant 0 : i32
    return %c0_i32, %c0_i32_0 : i32, i32
  }
  func.func @transform_3(%arg0: i32) -> (i32, i32, i32) {
    %c0_i32 = arith.constant 0 : i32
    %c0_i32_0 = arith.constant 0 : i32
    %c0_i32_1 = arith.constant 0 : i32
    %c0_i32_2 = arith.constant 0 : i32
    return %c0_i32, %c0_i32_0, %c0_i32_1 : i32, i32, i32
  }
  func.func @transform_4(%arg0: i32) -> (i32, i32, i32) {
    %c0_i32 = arith.constant 0 : i32
    %c0_i32_0 = arith.constant 0 : i32
    %c0_i32_1 = arith.constant 0 : i32
    %c0_i32_2 = arith.constant 0 : i32
    return %c0_i32, %c0_i32_0, %c0_i32_1 : i32, i32, i32
  }
  func.func @transform_5(%arg0: i32) -> (i32, i32) {
    %c0_i32 = arith.constant 0 : i32
    %c0_i32_0 = arith.constant 0 : i32
    %c0_i32_1 = arith.constant 0 : i32
    return %c0_i32, %c0_i32_0 : i32, i32
  }
  func.func @transform_6(%arg0: i32) -> (i32, i32) {
    %c0_i32 = arith.constant 0 : i32
    %c0_i32_0 = arith.constant 0 : i32
    %c0_i32_1 = arith.constant 0 : i32
    return %c0_i32, %c0_i32_0 : i32, i32
  }
  func.func @transform_7(%arg0: i32) -> (i32, i32) {
    %c0_i32 = arith.constant 0 : i32
    %c0_i32_0 = arith.constant 0 : i32
    return %c0_i32, %arg0 : i32, i32
  }
}

</mosaic_0001>

<llo_original>
// kernel: tpu_custom_call.1
$region0: #{tpu_custom_call.1}
  #allocation0 [shape = 'u32[]', space=smem, size = 0x4, offset = 0x4, fixed_abs, tag = 'smem constant byte address 0x4 - core index']
  #allocation1 [shape = 'u32[72,128]{1,0:T(1,128)}', space=vmem, size = 0x9000, scoped, tag = 'internal scratch']
  #allocation2 [shape = 'f32[1,1]{1,0:T(1,128)S(1)}', space=vmem, size = 0x200, scoped, tag = 'scoped memory for tpu_custom_call.1']
  %s0 = inlined_call_operand.vmem [shape: f32[20,8], index: 0, kind: input, shape index: {}]
  %s1 = inlined_call_operand.vmem [shape: f32[32,20], index: 1, kind: input, shape index: {}]
  %s2 = inlined_call_operand.vmem [shape: f32[32,1], index: 2, kind: input, shape index: {}]
  %s3 = inlined_call_operand.vmem [shape: f32[2,32,32], index: 3, kind: input, shape index: {}]
  %s4 = inlined_call_operand.vmem [shape: f32[2,32,1], index: 4, kind: input, shape index: {}]
  %s5 = inlined_call_operand.vmem [shape: f32[32,1], index: 5, kind: input, shape index: {}]
  %s6 = inlined_call_operand.<no memory space> [shape: f32[1,1], index: 6, kind: input, shape index: {}]
  %s7 = inlined_call_operand.hbm [shape: f32[1,8], index: 7, kind: output, shape index: {}]
  %s8 = sld [smem:[#allocation0]]
  $region38: #{tpu_custom_call.1} parent=0
    _
  %s10 = ssub.s32 1, %s8
  %s11 = scalar_select 0, %s10, %s8
  %v12 = vstv %s6
  %13 = vst [vmem:[#allocation2] sm:$0x1] %v12
  $region1: #{tpu_custom_call.1} parent=0
    #allocation3 [shape = 'u8[512]{0}', space=vmem, size = 0x400, scoped, tag = 'output window, operand 0, single buffered']
    #allocation4 [shape = 's32[1]{0}', space=sflag, size = 0x4, scoped, tag = 'scoped memory for tpu_custom_call.1']
    %14 = vsyncpa [#allocation4], 0
    // Predicated region
    $region2: #{tpu_custom_call.1} parent=1 // pred_check
      _
    $region3: #{tpu_custom_call.1} parent=1 // pred_check_branch
      %16 = sbr.rel (0) target = $region5
    $region4: #{tpu_custom_call.1} parent=1 // pred_region
      _
    $region5: #{tpu_custom_call.1} parent=1 // pred_fallthru
      _
    // Predicated region
    $region6: #{tpu_custom_call.1} parent=1 // pred_check
      _
    $region7: #{tpu_custom_call.1} parent=1 // pred_check_branch
      %18 = sbr.rel (0) target = $region9
    $region8: #{tpu_custom_call.1} parent=1 // pred_region
      _
    $region9: #{tpu_custom_call.1} parent=1 // pred_fallthru
      _
    // Predicated region
    $region10: #{tpu_custom_call.1} parent=1 // pred_check
      _
    $region11: #{tpu_custom_call.1} parent=1 // pred_check_branch
      %20 = sbr.rel (0) target = $region13
    $region12: #{tpu_custom_call.1} parent=1 // pred_region
      _
    $region13: #{tpu_custom_call.1} parent=1 // pred_fallthru
      _
    // Predicated region
    $region14: #{tpu_custom_call.1} parent=1 // pred_check
      _
    $region15: #{tpu_custom_call.1} parent=1 // pred_check_branch
      %22 = sbr.rel (0) target = $region17
    $region16: #{tpu_custom_call.1} parent=1 // pred_region
      _
    $region17: #{tpu_custom_call.1} parent=1 // pred_fallthru
      _
    // Predicated region
    $region18: #{tpu_custom_call.1} parent=1 // pred_check
      _
    $region19: #{tpu_custom_call.1} parent=1 // pred_check_branch
      %24 = sbr.rel (0) target = $region21
    $region20: #{tpu_custom_call.1} parent=1 // pred_region
      _
    $region21: #{tpu_custom_call.1} parent=1 // pred_fallthru
      _
    // Predicated region
    $region22: #{tpu_custom_call.1} parent=1 // pred_check
      _
    $region23: #{tpu_custom_call.1} parent=1 // pred_check_branch
      %26 = sbr.rel (0) target = $region25
    $region24: #{tpu_custom_call.1} parent=1 // pred_region
      _
    $region25: #{tpu_custom_call.1} parent=1 // pred_fallthru
      _
    // Predicated region
    $region26: #{tpu_custom_call.1} parent=1 // pred_check
      _
    $region27: #{tpu_custom_call.1} parent=1 // pred_check_branch
      %28 = sbr.rel (0) target = $region29
    $region28: #{tpu_custom_call.1} parent=1 // pred_region
      _
    $region29: #{tpu_custom_call.1} parent=1 // pred_fallthru
      _
    %v29 = vld [vmem:[%s1] sm:$0xff]
    %v30 = vld [vmem:[%s1 + $0x8] sm:$0xff]
    %v31 = vld [vmem:[%s1 + $0x10] sm:$0xff]
    %v32 = vld [vmem:[%s1 + $0x18] sm:$0xff]
    %v33 = vld [vmem:[%s0] sm:$0xff]
    %v34 = vld [vmem:[%s0 + $0x8] sm:$0xff]
    %v35 = vld [vmem:[%s0 + $0x10] sm:$0xf]
    %v36 = vld [vmem:[%s2] sm:$0xff]
    %v37 = vld [vmem:[%s2 + $0x8] sm:$0xff]
    %v38 = vld [vmem:[%s2 + $0x10] sm:$0xff]
    %v39 = vld [vmem:[%s2 + $0x18] sm:$0xff]
    %41 = vset.pattern.permute.xlu0 0
    %42 = vperm.xlu0 %41, %v36
    %v43 = vpop.permute.xlu0 %42
    %46 = vset.pattern.permute.xlu0 0
    %47 = vperm.xlu0 %46, %v37
    %v48 = vpop.permute.xlu0 %47
    %51 = vset.pattern.permute.xlu0 0
    %52 = vperm.xlu0 %51, %v38
    %v53 = vpop.permute.xlu0 %52
    %56 = vset.pattern.permute.xlu0 0
    %57 = vperm.xlu0 %56, %v39
    %v58 = vpop.permute.xlu0 %57
    %vm60 = vcmask 162816
    %v62 = vsel %vm60, %v29, 0
    %v65 = vsel %vm60, %v30, 0
    %v68 = vsel %vm60, %v31, 0
    %v71 = vsel %vm60, %v32, 0
    %vm73 = vcmask 1043456
    %v75 = vsel %vm73, %v35, 0
    %77 = vmatpush.msra.mxu0 0.0
    %78 = vmatpush.msra.mxu0 0.0
    %79 = vmatpush.msra.mxu0 0.0
    %80 = vmatpush.msra.mxu0 0.0
    %81 = vmatpush.msra.mxu0 0.0
    %82 = vmatpush.msra.mxu0 0.0
    %83 = vmatpush.msra.mxu0 0.0
    %84 = vmatpush.msra.mxu0 0.0
    %85 = vmatpush.msra.mxu0 0.0
    %86 = vmatpush.msra.mxu0 0.0
    %87 = vmatpush.msra.mxu0 0.0
    %88 = vmatpush.msra.mxu0 0.0
    %89 = vmatpush.msra.mxu0 0.0
    %90 = vmatpush.msra.mxu0 %v75
    %91 = vmatpush.msra.mxu0 %v34
    %92 = vmatpush.msra.mxu0 %v33
    %93 = vmatmul.f32.gmra.mxu0 %v62
    %v94 = vpop.f32.mrf.mxu0
    %v95 = vadd.f32 %v43, %v94
    %96 = vmatmul.f32.gmra.mxu0 %v65
    %v97 = vpop.f32.mrf.mxu0
    %v98 = vadd.f32 %v48, %v97
    %99 = vmatmul.f32.gmra.mxu0 %v68
    %v100 = vpop.f32.mrf.mxu0
    %v101 = vadd.f32 %v53, %v100
    %102 = vmatmul.f32.gmra.mxu0 %v71
    %v103 = vpop.f32.mrf.mxu0
    %v104 = vadd.f32 %v58, %v103
    %105 = vdwg.mxu0
    %v106 = vmax.f32 %v95, 0.0
    %v107 = vmax.f32 %v98, 0.0
    %v108 = vmax.f32 %v101, 0.0
    %v109 = vmax.f32 %v104, 0.0
    %v110 = vld [vmem:[%s3] sm:$0xff]
    %v111 = vld [vmem:[%s3 + $0x8] sm:$0xff]
    %v112 = vld [vmem:[%s3 + $0x10] sm:$0xff]
    %v113 = vld [vmem:[%s3 + $0x18] sm:$0xff]
    %v114 = vld [vmem:[%s4] sm:$0xff]
    %v115 = vld [vmem:[%s4 + $0x8] sm:$0xff]
    %v116 = vld [vmem:[%s4 + $0x10] sm:$0xff]
    %v117 = vld [vmem:[%s4 + $0x18] sm:$0xff]
    %119 = vset.pattern.permute.xlu0 0
    %120 = vperm.xlu0 %119, %v114
    %v121 = vpop.permute.xlu0 %120
    %124 = vset.pattern.permute.xlu0 0
    %125 = vperm.xlu0 %124, %v115
    %v126 = vpop.permute.xlu0 %125
    %129 = vset.pattern.permute.xlu0 0
    %130 = vperm.xlu0 %129, %v116
    %v131 = vpop.permute.xlu0 %130
    %134 = vset.pattern.permute.xlu0 0
    %135 = vperm.xlu0 %134, %v117
    %v136 = vpop.permute.xlu0 %135
    %vm138 = vcmask 261120
    %v140 = vsel %vm138, %v110, 0
    %v143 = vsel %vm138, %v111, 0
    %v146 = vsel %vm138, %v112, 0
    %v149 = vsel %vm138, %v113, 0
    %151 = vmatpush.msra.mxu0 0.0
    %152 = vmatpush.msra.mxu0 0.0
    %153 = vmatpush.msra.mxu0 0.0
    %154 = vmatpush.msra.mxu0 0.0
    %155 = vmatpush.msra.mxu0 0.0
    %156 = vmatpush.msra.mxu0 0.0
    %157 = vmatpush.msra.mxu0 0.0
    %158 = vmatpush.msra.mxu0 0.0
    %159 = vmatpush.msra.mxu0 0.0
    %160 = vmatpush.msra.mxu0 0.0
    %161 = vmatpush.msra.mxu0 0.0
    %162 = vmatpush.msra.mxu0 0.0
    %163 = vmatpush.msra.mxu0 %v109
    %164 = vmatpush.msra.mxu0 %v108
    %165 = vmatpush.msra.mxu0 %v107
    %166 = vmatpush.msra.mxu0 %v106
    %167 = vmatmul.f32.gmra.mxu0 %v140
    %v168 = vpop.f32.mrf.mxu0
    %v169 = vadd.f32 %v121, %v168
    %170 = vmatmul.f32.gmra.mxu0 %v143
    %v171 = vpop.f32.mrf.mxu0
    %v172 = vadd.f32 %v126, %v171
    %173 = vmatmul.f32.gmra.mxu0 %v146
    %v174 = vpop.f32.mrf.mxu0
    %v175 = vadd.f32 %v131, %v174
    %176 = vmatmul.f32.gmra.mxu0 %v149
    %v177 = vpop.f32.mrf.mxu0
    %v178 = vadd.f32 %v136, %v177
    %179 = vdwg.mxu0
    %v180 = vmax.f32 %v169, 0.0
    %v181 = vmax.f32 %v172, 0.0
    %v182 = vmax.f32 %v175, 0.0
    %v183 = vmax.f32 %v178, 0.0
    %s184 = scalar_lea.vmem %s3, 32
    %v185 = vld [vmem:[%s184] sm:$0xff]
    %v186 = vld [vmem:[%s184 + $0x8] sm:$0xff]
    %v187 = vld [vmem:[%s184 + $0x10] sm:$0xff]
    %v188 = vld [vmem:[%s184 + $0x18] sm:$0xff]
    %s189 = scalar_lea.vmem %s4, 32
    %v190 = vld [vmem:[%s189] sm:$0xff]
    %v191 = vld [vmem:[%s189 + $0x8] sm:$0xff]
    %v192 = vld [vmem:[%s189 + $0x10] sm:$0xff]
    %v193 = vld [vmem:[%s189 + $0x18] sm:$0xff]
    %195 = vset.pattern.permute.xlu0 0
    %196 = vperm.xlu0 %195, %v190
    %v197 = vpop.permute.xlu0 %196
    %200 = vset.pattern.permute.xlu0 0
    %201 = vperm.xlu0 %200, %v191
    %v202 = vpop.permute.xlu0 %201
    %205 = vset.pattern.permute.xlu0 0
    %206 = vperm.xlu0 %205, %v192
    %v207 = vpop.permute.xlu0 %206
    %210 = vset.pattern.permute.xlu0 0
    %211 = vperm.xlu0 %210, %v193
    %v212 = vpop.permute.xlu0 %211
    %v215 = vsel %vm138, %v185, 0
    %v218 = vsel %vm138, %v186, 0
    %v221 = vsel %vm138, %v187, 0
    %v224 = vsel %vm138, %v188, 0
    %226 = vmatpush.msra.mxu0 0.0
    %227 = vmatpush.msra.mxu0 0.0
    %228 = vmatpush.msra.mxu0 0.0
    %229 = vmatpush.msra.mxu0 0.0
    %230 = vmatpush.msra.mxu0 0.0
    %231 = vmatpush.msra.mxu0 0.0
    %232 = vmatpush.msra.mxu0 0.0
    %233 = vmatpush.msra.mxu0 0.0
    %234 = vmatpush.msra.mxu0 0.0
    %235 = vmatpush.msra.mxu0 0.0
    %236 = vmatpush.msra.mxu0 0.0
    %237 = vmatpush.msra.mxu0 0.0
    %238 = vmatpush.msra.mxu0 %v183
    %239 = vmatpush.msra.mxu0 %v182
    %240 = vmatpush.msra.mxu0 %v181
    %241 = vmatpush.msra.mxu0 %v180
    %242 = vmatmul.f32.gmra.mxu0 %v215
    %v243 = vpop.f32.mrf.mxu0
    %v244 = vadd.f32 %v197, %v243
    %245 = vmatmul.f32.gmra.mxu0 %v218
    %v246 = vpop.f32.mrf.mxu0
    %v247 = vadd.f32 %v202, %v246
    %248 = vmatmul.f32.gmra.mxu0 %v221
    %v249 = vpop.f32.mrf.mxu0
    %v250 = vadd.f32 %v207, %v249
    %251 = vmatmul.f32.gmra.mxu0 %v224
    %v252 = vpop.f32.mrf.mxu0
    %v253 = vadd.f32 %v212, %v252
    %254 = vdwg.mxu0
    %v255 = vmax.f32 %v244, 0.0
    %v256 = vmax.f32 %v247, 0.0
    %v257 = vmax.f32 %v250, 0.0
    %v258 = vmax.f32 %v253, 0.0
    %v259 = vld [vmem:[%s5] sm:$0xff]
    %v260 = vld [vmem:[%s5 + $0x8] sm:$0xff]
    %v261 = vld [vmem:[%s5 + $0x10] sm:$0xff]
    %v262 = vld [vmem:[%s5 + $0x18] sm:$0xff]
    %264 = vset.pattern.permute.xlu0 0
    %265 = vperm.xlu0 %264, %v259
    %v266 = vpop.permute.xlu0 %265
    %269 = vset.pattern.permute.xlu0 0
    %270 = vperm.xlu0 %269, %v260
    %v271 = vpop.permute.xlu0 %270
    %274 = vset.pattern.permute.xlu0 0
    %275 = vperm.xlu0 %274, %v261
    %v276 = vpop.permute.xlu0 %275
    %279 = vset.pattern.permute.xlu0 0
    %280 = vperm.xlu0 %279, %v262
    %v281 = vpop.permute.xlu0 %280
    %v283 = vmul.f32 %v255, %v266
    %v284 = vmul.f32 %v256, %v271
    %v285 = vmul.f32 %v257, %v276
    %v286 = vmul.f32 %v258, %v281
    %vm287 = vcmask 64512
    %v288 = vsel %vm287, %v283, 0.0
    %v289 = vsel %vm287, %v284, 0.0
    %v290 = vadd.f32 %v288, %v289
    %v291 = vsel %vm287, %v285, 0.0
    %v292 = vadd.f32 %v290, %v291
    %v293 = vsel %vm287, %v286, 0.0
    %v294 = vadd.f32 %v292, %v293
    %v295 = vrot.slane %v294, 4
    %v296 = vadd.f32 %v294, %v295
    %v297 = vrot.slane %v296, 2
    %v298 = vadd.f32 %v296, %v297
    %v299 = vrot.slane %v298, 1
    %v300 = vadd.f32 %v298, %v299
    %v301 = vld [vmem:[#allocation2] sm:$0x1]
    %303 = vset.pattern.permute.xlu0 0
    %304 = vperm.xlu0 %303, %v301
    %v305 = vpop.permute.xlu0 %304
    %v307 = vperm.slane %v305, 0
    %v308 = vadd.f32 %v300, %v307
    %vm309 = vcmask 57344
    %310 = vst.msk [vmem:[#allocation3] sm:$0x1] %vm309, %v308
    // Predicated region
    $region30: #{tpu_custom_call.1} parent=1 // pred_check
      _
    $region31: #{tpu_custom_call.1} parent=1 // pred_check_branch
      %312 = sbr.rel (0) target = $region33
    $region32: #{tpu_custom_call.1} parent=1 // pred_region
      %314 = vsyncadd [#allocation4], 0
      %s316 = sshll.u32 [#allocation3], 4
      %s317 = int_to_ptr.vmem [resolvable:$true] %s316
      %s318 = sshll.u32 %s7, 4
      %s319 = int_to_ptr.hbm [resolvable:$true] %s318
      %321 = dma.vmem_to_hbm [thread:$0]  %s317, 16, %s319, [#allocation4]
    $region33: #{tpu_custom_call.1} parent=1 // pred_fallthru
      _
    // Predicated region
    $region34: #{tpu_custom_call.1} parent=1 // pred_check
      _
    $region35: #{tpu_custom_call.1} parent=1 // pred_check_branch
      %323 = sbr.rel (0) target = $region37
    $region36: #{tpu_custom_call.1} parent=1 // pred_region
      %325 = dma.done [#allocation4], 16
    $region37: #{tpu_custom_call.1} parent=1 // pred_fallthru
      _
    %326 = vsyncpa [#allocation4], 1

</llo_original>
